<compile_context>
chip_gen: v7x
topology: tpu7x:2x2x1
jax: 0.10.0
libtpu: 0.0.40
codegen_flags: <defaults>
</compile_context>

<pallas_src>
import jax
import jax.numpy as jnp
from jax.experimental import pallas as pl
from jax.experimental.pallas import tpu as pltpu


def _round_up(x, m):
    return ((x + m - 1) // m) * m


def _cdiv(a, b):
    return -(-a // b)


# -----------------------------------------------------------------------------
# Kernel: one batch tile through the whole 3-layer MLP.
#   obs_ref : (TB, num_obs)     f32
#   act_ref : (TB, num_action)  f32
#   w1o/w1a : (num_obs, H1_P) / (num_action, H1_P)  bf16
#   b1      : (1, H1_P) f32
#   w2      : (H1_P, H2_P) bf16 ; b2 : (1, H2_P) f32
#   w3      : (1, H2_P) f32     ; b3 : (1, 1) f32
#   o_ref   : (TB, 1) f32       (the Q-value column, no padding lanes)
# -----------------------------------------------------------------------------
def critic_kernel(obs_ref, act_ref, w1o_ref, w1a_ref, b1_ref,
                  w2_ref, b2_ref, w3_ref, b3_ref, o_ref):
    # Layer 1: split-K Linear (obs part + action part) + ReLU.
    # Casts to bf16 happen here, right before the MXU; accumulation is f32.
    obs_b = obs_ref[...].astype(jnp.bfloat16)
    act_b = act_ref[...].astype(jnp.bfloat16)
    h1 = (jnp.dot(obs_b, w1o_ref[...], preferred_element_type=jnp.float32)
          + jnp.dot(act_b, w1a_ref[...], preferred_element_type=jnp.float32))
    h1 = jnp.maximum(h1 + b1_ref[...], 0.0)              # f32 VPU math

    # Layer 2: Linear + ReLU.
    h2 = jnp.dot(h1.astype(jnp.bfloat16), w2_ref[...],
                 preferred_element_type=jnp.float32)
    h2 = jnp.maximum(h2 + b2_ref[...], 0.0)

    # Layer 3: scalar head. VPU multiply against the real w3 row + XLU lane
    # reduction — no zero-padded MXU matmul, no padded output lanes.
    q = jnp.sum(h2 * w3_ref[...], axis=-1, keepdims=True)  # (TB, 1) f32
    o_ref[...] = q + b3_ref[...]


# -----------------------------------------------------------------------------
# Wrapper
# -----------------------------------------------------------------------------
def critic_forward(obs, action, params, *, grid_steps=2, max_tb=4096):
    """obs: (B, num_obs) f32, action: (B, num_action) f32 -> (B, 1) f32."""
    w1o, w1a, b1 = params["w1_obs"], params["w1_act"], params["b1"]
    w2, b2 = params["w2"], params["b2"]
    w3, b3 = params["w3"], params["b3"]

    B, n_obs = obs.shape
    n_act = action.shape[1]
    h1_p = w1o.shape[1]
    h2_p = w2.shape[1]

    # Tile selection: aim for `grid_steps` steps (2 => both v7x TensorCores),
    # tile rounded to 128 rows for lane/sublane-friendly blocks, capped so very
    # large batches still fit comfortably in VMEM.
    tb = min(_round_up(_cdiv(B, grid_steps), 128), max_tb)
    steps = _cdiv(B, tb)
    b_pad = steps * tb

    # Only the batch axis may need padding (no-op when B is already aligned,
    # e.g. B=256 with tb=128).  No concat / feature padding / dtype cast here.
    obs_p = jnp.pad(obs, ((0, b_pad - B), (0, 0)))
    act_p = jnp.pad(action, ((0, b_pad - B), (0, 0)))

    # Advisory cost hint for XLA's scheduler.
    flops = 2 * B * ((n_obs + n_act) * h1_p + h1_p * h2_p + h2_p)
    param_bytes = sum(int(p.size) * p.dtype.itemsize
                      for p in (w1o, w1a, b1, w2, b2, w3, b3))
    bytes_accessed = (int(obs_p.size) * 4 + int(act_p.size) * 4
                      + param_bytes + b_pad * 4)

    out = pl.pallas_call(
        critic_kernel,
        out_shape=jax.ShapeDtypeStruct((b_pad, 1), jnp.float32),
        grid=(steps,),
        in_specs=[
            # Activations: tiled over the batch (full feature width per block).
            pl.BlockSpec((tb, n_obs), lambda i: (i, 0)),
            pl.BlockSpec((tb, n_act), lambda i: (i, 0)),
            # Weights / biases: constant index_map -> VMEM resident.
            pl.BlockSpec(w1o.shape, lambda i: (0, 0)),
            pl.BlockSpec(w1a.shape, lambda i: (0, 0)),
            pl.BlockSpec(b1.shape, lambda i: (0, 0)),
            pl.BlockSpec(w2.shape, lambda i: (0, 0)),
            pl.BlockSpec(b2.shape, lambda i: (0, 0)),
            pl.BlockSpec(w3.shape, lambda i: (0, 0)),
            pl.BlockSpec(b3.shape, lambda i: (0, 0)),
        ],
        out_specs=pl.BlockSpec((tb, 1), lambda i: (i, 0)),
        compiler_params=pltpu.CompilerParams(
            dimension_semantics=("parallel",)),            # 2 TCs on v7x
        cost_estimate=pl.CostEstimate(
            flops=flops, transcendentals=0, bytes_accessed=bytes_accessed),
    )(obs_p, act_p, w1o, w1a, b1, w2, b2, w3, b3)

    return out[:B]          # (B, 1) — padded batch rows dropped


# -----------------------------------------------------------------------------
# Parameter init: mimics nn.Linear (uniform +-1/sqrt(fan_in)).
# Returns:
#   params     : kernel-side params (split/padded, bf16 for layers 1-2)
#   params_f32 : unpadded, transposed f32 weights/biases (pure-JAX reference)
# -----------------------------------------------------------------------------
def init_critic_params(key, num_obs, num_action, num_hidden_1, num_hidden_2):
    in_dim = num_obs + num_action
    h1_p = _round_up(num_hidden_1, 128)
    h2_p = _round_up(num_hidden_2, 128)

    ks = jax.random.split(key, 6)

    def linear(kw, kb, fan_in, fan_out):
        bound = 1.0 / (fan_in ** 0.5)
        # PyTorch stores (out, in); we work with (in, out).
        w = jax.random.uniform(kw, (fan_in, fan_out), jnp.float32, -bound, bound)
        b = jax.random.uniform(kb, (fan_out,), jnp.float32, -bound, bound)
        return w, b

    w1, b1 = linear(ks[0], ks[1], in_dim, num_hidden_1)
    w2, b2 = linear(ks[2], ks[3], num_hidden_1, num_hidden_2)
    w3, b3 = linear(ks[4], ks[5], num_hidden_2, 1)

    # Kernel-side layout: pad hidden dims to 128 lanes, split w1 by input
    # source (obs vs action) so the kernel never needs a concatenated input.
    w1_pad = jnp.zeros((in_dim, h1_p), jnp.float32).at[:, :num_hidden_1].set(w1)
    w1_obs = w1_pad[:num_obs].astype(jnp.bfloat16)            # (num_obs, H1_P)
    w1_act = w1_pad[num_obs:].astype(jnp.bfloat16)            # (num_action, H1_P)
    b1_pad = jnp.zeros((1, h1_p), jnp.float32).at[0, :num_hidden_1].set(b1)

    w2_pad = (jnp.zeros((h1_p, h2_p), jnp.float32)
              .at[:num_hidden_1, :num_hidden_2].set(w2)).astype(jnp.bfloat16)
    b2_pad = jnp.zeros((1, h2_p), jnp.float32).at[0, :num_hidden_2].set(b2)

    # Layer-3 weight kept f32 as a single row (used on the VPU, not the MXU).
    w3_row = jnp.zeros((1, h2_p), jnp.float32).at[0, :num_hidden_2].set(w3[:, 0])
    b3_s = b3.reshape(1, 1)

    params = dict(w1_obs=w1_obs, w1_act=w1_act, b1=b1_pad,
                  w2=w2_pad, b2=b2_pad, w3=w3_row, b3=b3_s)
    params_f32 = dict(w1=w1, b1=b1.reshape(1, -1), w2=w2, b2=b2.reshape(1, -1),
                      w3=w3, b3=b3.reshape(1, 1))
    return params, params_f32


# -----------------------------------------------------------------------------
# References
# -----------------------------------------------------------------------------
def critic_ref_f32(obs, action, p):
    """Exact original-module semantics in pure f32 JAX."""
    x = jnp.concatenate([obs, action], axis=1)
    h1 = jnp.maximum(x @ p["w1"] + p["b1"], 0.0)
    h2 = jnp.maximum(h1 @ p["w2"] + p["b2"], 0.0)
    return h2 @ p["w3"] + p["b3"]


def critic_ref_bf16(obs, action, params):
    """Pure-JAX reference mirroring the kernel's mixed-precision math."""
    ob = obs.astype(jnp.bfloat16)
    ab = action.astype(jnp.bfloat16)
    h1 = (jnp.dot(ob, params["w1_obs"], preferred_element_type=jnp.float32)
          + jnp.dot(ab, params["w1_act"], preferred_element_type=jnp.float32))
    h1 = jnp.maximum(h1 + params["b1"], 0.0)
    h2 = jnp.maximum(
        jnp.dot(h1.astype(jnp.bfloat16), params["w2"],
                preferred_element_type=jnp.float32) + params["b2"], 0.0)
    q = jnp.sum(h2 * params["w3"], axis=-1, keepdims=True) + params["b3"]
    return q


if __name__ == "__main__":
    # Small shapes consistent with a DDPG critic: concat(obs, action) -> Q.
    batch = 256          # exercises 2 parallel grid steps of 128 rows
    num_obs = 24
    num_action = 8
    num_hidden_1 = 64
    num_hidden_2 = 64

    key = jax.random.PRNGKey(0)
    k_param, k_obs, k_act = jax.random.split(key, 3)
    params, params_f32 = init_critic_params(
        k_param, num_obs, num_action, num_hidden_1, num_hidden_2)

    obs = jax.random.normal(k_obs, (batch, num_obs), jnp.float32)
    action = jax.random.normal(k_act, (batch, num_action), jnp.float32)

    value = critic_forward(obs, action, params)
    value = jax.block_until_ready(value)
    assert value.shape == (batch, 1)

    # Strict check against a reference that mirrors the kernel's numerics.
    ref_b = critic_ref_bf16(obs, action, params)
    assert jnp.allclose(value, ref_b, atol=2e-3, rtol=2e-3), \
        "mismatch vs bf16-matched reference"

    # Loose check against the full-f32 original-module semantics
    # (bf16 weights -> ~0.4% per-element rounding, so tolerance is widened).
    ref_f = critic_ref_f32(obs, action, params_f32)
    assert jnp.allclose(value, ref_f, atol=1e-1, rtol=1e-1), \
        "mismatch vs f32 reference"

    print("KERNEL_OK")
</pallas_src>

<mosaic_0001>
module attributes {stable_mosaic.version = 11 : i64} {
  func.func @critic_kernel(%arg0: i32, %arg1: memref<128x24xf32, #tpu.memory_space<vmem>>, %arg2: memref<128x8xf32, #tpu.memory_space<vmem>>, %arg3: memref<24x128xbf16, #tpu.memory_space<vmem>>, %arg4: memref<8x128xbf16, #tpu.memory_space<vmem>>, %arg5: memref<1x128xf32, #tpu.memory_space<vmem>>, %arg6: memref<128x128xbf16, #tpu.memory_space<vmem>>, %arg7: memref<1x128xf32, #tpu.memory_space<vmem>>, %arg8: memref<1x128xf32, #tpu.memory_space<vmem>>, %arg9: memref<1x1xf32, #tpu.memory_space<vmem>>, %arg10: memref<128x1xf32, #tpu.memory_space<vmem>>) attributes {dimension_semantics = [#tpu.dimension_semantics<parallel>], iteration_bounds = array<i64: 2>, scalar_prefetch = 0 : i64, scratch_operands = 0 : i64, tpu.core_type = #tpu.core_type<tc>, window_params = [{transform_indices = @transform_0, window_bounds = array<i64: 128, 24>}, {transform_indices = @transform_1, window_bounds = array<i64: 128, 8>}, {pipeline_mode = #tpu.pipeline_mode<synchronous>, transform_indices = @transform_2, window_bounds = array<i64: 24, 128>}, {pipeline_mode = #tpu.pipeline_mode<synchronous>, transform_indices = @transform_3, window_bounds = array<i64: 8, 128>}, {pipeline_mode = #tpu.pipeline_mode<synchronous>, transform_indices = @transform_4, window_bounds = array<i64: 1, 128>}, {pipeline_mode = #tpu.pipeline_mode<synchronous>, transform_indices = @transform_5, window_bounds = array<i64: 128, 128>}, {pipeline_mode = #tpu.pipeline_mode<synchronous>, transform_indices = @transform_6, window_bounds = array<i64: 1, 128>}, {pipeline_mode = #tpu.pipeline_mode<synchronous>, transform_indices = @transform_7, window_bounds = array<i64: 1, 128>}, {pipeline_mode = #tpu.pipeline_mode<synchronous>, transform_indices = @transform_8, window_bounds = array<i64: 1, 1>}, {transform_indices = @transform_9, window_bounds = array<i64: 128, 1>}]} {
    %c0 = arith.constant 0 : index
    %c0_0 = arith.constant 0 : index
    %0 = vector.load %arg1[%c0, %c0_0] : memref<128x24xf32, #tpu.memory_space<vmem>>, vector<128x24xf32>
    %1 = arith.truncf %0 : vector<128x24xf32> to vector<128x24xbf16>
    %c0_1 = arith.constant 0 : index
    %c0_2 = arith.constant 0 : index
    %2 = vector.load %arg2[%c0_1, %c0_2] : memref<128x8xf32, #tpu.memory_space<vmem>>, vector<128x8xf32>
    %3 = arith.truncf %2 : vector<128x8xf32> to vector<128x8xbf16>
    %c0_3 = arith.constant 0 : index
    %c0_4 = arith.constant 0 : index
    %4 = vector.load %arg3[%c0_3, %c0_4] : memref<24x128xbf16, #tpu.memory_space<vmem>>, vector<24x128xbf16>
    %cst = arith.constant dense<0.000000e+00> : vector<128x128xf32>
    %5 = tpu.matmul %1, %4, %cst {dimension_numbers = #tpu.dot_dimension_numbers<[1], [0], [0], [1], [0, 0, 1, 1], [], []>} : vector<128x24xbf16>, vector<24x128xbf16>, vector<128x128xf32> -> vector<128x128xf32>
    %c0_5 = arith.constant 0 : index
    %c0_6 = arith.constant 0 : index
    %6 = vector.load %arg4[%c0_5, %c0_6] : memref<8x128xbf16, #tpu.memory_space<vmem>>, vector<8x128xbf16>
    %cst_7 = arith.constant dense<0.000000e+00> : vector<128x128xf32>
    %7 = tpu.matmul %3, %6, %cst_7 {dimension_numbers = #tpu.dot_dimension_numbers<[1], [0], [0], [1], [0, 0, 1, 1], [], []>} : vector<128x8xbf16>, vector<8x128xbf16>, vector<128x128xf32> -> vector<128x128xf32>
    %8 = arith.addf %5, %7 : vector<128x128xf32>
    %c0_8 = arith.constant 0 : index
    %c0_9 = arith.constant 0 : index
    %9 = vector.load %arg5[%c0_8, %c0_9] : memref<1x128xf32, #tpu.memory_space<vmem>>, vector<1x128xf32>
    %10 = vector.broadcast %9 : vector<1x128xf32> to vector<128x128xf32>
    %11 = arith.addf %8, %10 : vector<128x128xf32>
    %cst_10 = arith.constant 0.000000e+00 : f32
    %12 = vector.broadcast %cst_10 : f32 to vector<128x128xf32>
    %13 = arith.maximumf %11, %12 : vector<128x128xf32>
    %14 = arith.truncf %13 : vector<128x128xf32> to vector<128x128xbf16>
    %c0_11 = arith.constant 0 : index
    %c0_12 = arith.constant 0 : index
    %15 = vector.load %arg6[%c0_11, %c0_12] : memref<128x128xbf16, #tpu.memory_space<vmem>>, vector<128x128xbf16>
    %cst_13 = arith.constant dense<0.000000e+00> : vector<128x128xf32>
    %16 = tpu.matmul %14, %15, %cst_13 {dimension_numbers = #tpu.dot_dimension_numbers<[1], [0], [0], [1], [0, 0, 1, 1], [], []>} : vector<128x128xbf16>, vector<128x128xbf16>, vector<128x128xf32> -> vector<128x128xf32>
    %c0_14 = arith.constant 0 : index
    %c0_15 = arith.constant 0 : index
    %17 = vector.load %arg7[%c0_14, %c0_15] : memref<1x128xf32, #tpu.memory_space<vmem>>, vector<1x128xf32>
    %18 = vector.broadcast %17 : vector<1x128xf32> to vector<128x128xf32>
    %19 = arith.addf %16, %18 : vector<128x128xf32>
    %cst_16 = arith.constant 0.000000e+00 : f32
    %20 = vector.broadcast %cst_16 : f32 to vector<128x128xf32>
    %21 = arith.maximumf %19, %20 : vector<128x128xf32>
    %c0_17 = arith.constant 0 : index
    %c0_18 = arith.constant 0 : index
    %22 = vector.load %arg8[%c0_17, %c0_18] : memref<1x128xf32, #tpu.memory_space<vmem>>, vector<1x128xf32>
    %23 = vector.broadcast %22 : vector<1x128xf32> to vector<128x128xf32>
    %24 = arith.mulf %21, %23 : vector<128x128xf32>
    %cst_19 = arith.constant dense<0.000000e+00> : vector<128xf32>
    %25 = vector.multi_reduction <add>, %24, %cst_19 [1] : vector<128x128xf32> to vector<128xf32>
    %26 = vector.shape_cast %25 : vector<128xf32> to vector<128x1xf32>
    %c0_20 = arith.constant 0 : index
    %c0_21 = arith.constant 0 : index
    %27 = vector.load %arg9[%c0_20, %c0_21] : memref<1x1xf32, #tpu.memory_space<vmem>>, vector<1x1xf32>
    %28 = vector.broadcast %27 : vector<1x1xf32> to vector<128x1xf32>
    %29 = arith.addf %26, %28 : vector<128x1xf32>
    %c0_22 = arith.constant 0 : index
    %c0_23 = arith.constant 0 : index
    %30 = vector.load %arg10[%c0_22, %c0_23] : memref<128x1xf32, #tpu.memory_space<vmem>>, vector<128x1xf32>
    tpu.vector_store %arg10[%c0_22, %c0_23], %29 {strides = array<i32>} : memref<128x1xf32, #tpu.memory_space<vmem>>, vector<128x1xf32>,
    return
  }
  func.func @transform_0(%arg0: i32) -> (i32, i32) {
    %c0_i32 = arith.constant 0 : i32
    %c0_i32_0 = arith.constant 0 : i32
    return %arg0, %c0_i32 : i32, i32
  }
  func.func @transform_1(%arg0: i32) -> (i32, i32) {
    %c0_i32 = arith.constant 0 : i32
    %c0_i32_0 = arith.constant 0 : i32
    return %arg0, %c0_i32 : i32, i32
  }
  func.func @transform_2(%arg0: i32) -> (i32, i32) {
    %c0_i32 = arith.constant 0 : i32
    %c0_i32_0 = arith.constant 0 : i32
    %c0_i32_1 = arith.constant 0 : i32
    return %c0_i32, %c0_i32_0 : i32, i32
  }
  func.func @transform_3(%arg0: i32) -> (i32, i32) {
    %c0_i32 = arith.constant 0 : i32
    %c0_i32_0 = arith.constant 0 : i32
    %c0_i32_1 = arith.constant 0 : i32
    return %c0_i32, %c0_i32_0 : i32, i32
  }
  func.func @transform_4(%arg0: i32) -> (i32, i32) {
    %c0_i32 = arith.constant 0 : i32
    %c0_i32_0 = arith.constant 0 : i32
    %c0_i32_1 = arith.constant 0 : i32
    return %c0_i32, %c0_i32_0 : i32, i32
  }
  func.func @transform_5(%arg0: i32) -> (i32, i32) {
    %c0_i32 = arith.constant 0 : i32
    %c0_i32_0 = arith.constant 0 : i32
    %c0_i32_1 = arith.constant 0 : i32
    return %c0_i32, %c0_i32_0 : i32, i32
  }
  func.func @transform_6(%arg0: i32) -> (i32, i32) {
    %c0_i32 = arith.constant 0 : i32
    %c0_i32_0 = arith.constant 0 : i32
    %c0_i32_1 = arith.constant 0 : i32
    return %c0_i32, %c0_i32_0 : i32, i32
  }
  func.func @transform_7(%arg0: i32) -> (i32, i32) {
    %c0_i32 = arith.constant 0 : i32
    %c0_i32_0 = arith.constant 0 : i32
    %c0_i32_1 = arith.constant 0 : i32
    return %c0_i32, %c0_i32_0 : i32, i32
  }
  func.func @transform_8(%arg0: i32) -> (i32, i32) {
    %c0_i32 = arith.constant 0 : i32
    %c0_i32_0 = arith.constant 0 : i32
    %c0_i32_1 = arith.constant 0 : i32
    return %c0_i32, %c0_i32_0 : i32, i32
  }
  func.func @transform_9(%arg0: i32) -> (i32, i32) {
    %c0_i32 = arith.constant 0 : i32
    %c0_i32_0 = arith.constant 0 : i32
    return %arg0, %c0_i32 : i32, i32
  }
}

</mosaic_0001>

<llo_original>
// kernel: tpu_custom_call.1
$region0: #{tpu_custom_call.1}
  #allocation0 [shape = 'u32[]', space=smem, size = 0x4, offset = 0x4, fixed_abs, tag = 'smem constant byte address 0x4 - core index']
  #allocation1 [shape = 'u32[144,128]{1,0:T(1,128)}', space=vmem, size = 0x12000, scoped, tag = 'internal scratch']
  #allocation2 [shape = 'f32[1,1]{1,0:T(1,128)S(1)}', space=vmem, size = 0x200, scoped, tag = 'scoped memory for tpu_custom_call.1']
  %s0 = inlined_call_operand.vmem [shape: f32[256,24], index: 0, kind: input, shape index: {}]
  %s1 = inlined_call_operand.vmem [shape: f32[256,8], index: 1, kind: input, shape index: {}]
  %s2 = inlined_call_operand.vmem [shape: bf16[24,128], index: 2, kind: input, shape index: {}]
  %s3 = inlined_call_operand.vmem [shape: bf16[8,128], index: 3, kind: input, shape index: {}]
  %s4 = inlined_call_operand.vmem [shape: f32[1,128], index: 4, kind: input, shape index: {}]
  %s5 = inlined_call_operand.vmem [shape: bf16[128,128], index: 5, kind: input, shape index: {}]
  %s6 = inlined_call_operand.vmem [shape: f32[1,128], index: 6, kind: input, shape index: {}]
  %s7 = inlined_call_operand.vmem [shape: f32[1,128], index: 7, kind: input, shape index: {}]
  %s8 = inlined_call_operand.<no memory space> [shape: f32[1,1], index: 8, kind: input, shape index: {}]
  %s9 = inlined_call_operand.vmem [shape: f32[256,1], index: 9, kind: output, shape index: {}]
  %s10 = sld [smem:[#allocation0]]
  $region69: #{tpu_custom_call.1} parent=0
    _
  %s12 = ssub.s32 1, %s10
  %s13 = scalar_select 0, %s12, %s10
  %v14 = vstv %s8
  %15 = vst [vmem:[#allocation2] sm:$0x1] %v14
  loop: start=0, step=1, limit=4
  $region2: #{tpu_custom_call.1} parent=0 // loop_pre_header
    _
  $region3: #{tpu_custom_call.1} parent=0 // loop_header
    %s17 = sphi 0, %s21
    %p18 = scmp.ge.s32.totalorder %s17, 4
    %s27 = sphi 0, %s29
    %s30 = sphi 0, %s27
    %s31 = sphi 0, %s30
    %s47 = sphi 0, %s31
    %s53 = sphi 0, %s55
    %s56 = sphi 0, %s53
    %s57 = sphi 0, %s56
    %s73 = sphi 0, %s57
    %s77 = sphi 0, %s77
    %s79 = sphi 0, %s77
    %s80 = sphi 0, %s79
    %s94 = sphi 0, %s80
    %s98 = sphi 0, %s98
    %s100 = sphi 0, %s98
    %s101 = sphi 0, %s100
    %s115 = sphi 0, %s101
    %s119 = sphi 0, %s119
    %s121 = sphi 0, %s119
    %s122 = sphi 0, %s121
    %s136 = sphi 0, %s122
    %s140 = sphi 0, %s140
    %s142 = sphi 0, %s140
    %s143 = sphi 0, %s142
    %s157 = sphi 0, %s143
    %s161 = sphi 0, %s161
    %s163 = sphi 0, %s161
    %s164 = sphi 0, %s163
    %s178 = sphi 0, %s164
    %s182 = sphi 0, %s182
    %s184 = sphi 0, %s182
    %s185 = sphi 0, %s184
    %s199 = sphi 0, %s185
    %s203 = sphi 0, %s203
    %s205 = sphi 0, %s203
    %s206 = sphi 0, %s205
    %s220 = sphi 0, %s206
    %s226 = sphi 0, %s228
    %s229 = sphi 0, %s226
    %s230 = sphi 0, %s229
    %s246 = sphi 0, %s230
  $region4: #{tpu_custom_call.1} parent=0 // loop_header_branch
    %20 = sbr.rel (%p18) target = $region8
  $region5: #{tpu_custom_call.1} parent=0 // loop_body
    %s22 = ssub.s32 %s17, 1
    %s23 = ssub.s32 %s17, 2
    %s24 = sadd.s32 %s17, 1
    %s25 = ssub.s32 %s17, %s24
    %p26 = scmp.eq.s32.totalorder %s25, 0
    %s28 = sadd.s32 %s27, 1
    %s29 = scalar_select %p26, %s27, %s28
    %p32 = pneg %p26
    %p33 = scmp.eq.s32.totalorder %s17, 1
    %p34 = por %p32, %p33
    %p35 = scmp.ne.s32.totalorder %s27, %s30
    %p36 = scmp.eq.s32.totalorder %s17, 0
    %p37 = por %p35, %p36
    %p38 = scmp.ne.s32.totalorder %s27, %s30
    %p39 = scmp.eq.s32.totalorder %s22, 1
    %p40 = por %p38, %p39
    %p41 = scmp.ne.s32.totalorder %s30, %s31
    %p42 = scmp.eq.s32.totalorder %s22, 0
    %p43 = por %p41, %p42
    %p44 = scmp.ne.s32.totalorder %s30, %s31
    %p45 = scmp.eq.s32.totalorder %s23, 1
    %p46 = por %p44, %p45
    %p48 = scmp.ne.s32.totalorder %s31, %s47
    %p49 = scmp.eq.s32.totalorder %s23, 0
    %p50 = por %p48, %p49
    %s51 = ssub.s32 %s17, %s24
    %p52 = scmp.eq.s32.totalorder %s51, 0
    %s54 = sadd.s32 %s53, 1
    %s55 = scalar_select %p52, %s53, %s54
    %p58 = pneg %p52
    %p59 = scmp.eq.s32.totalorder %s17, 1
    %p60 = por %p58, %p59
    %p61 = scmp.ne.s32.totalorder %s53, %s56
    %p62 = scmp.eq.s32.totalorder %s17, 0
    %p63 = por %p61, %p62
    %p64 = scmp.ne.s32.totalorder %s53, %s56
    %p65 = scmp.eq.s32.totalorder %s22, 1
    %p66 = por %p64, %p65
    %p67 = scmp.ne.s32.totalorder %s56, %s57
    %p68 = scmp.eq.s32.totalorder %s22, 0
    %p69 = por %p67, %p68
    %p70 = scmp.ne.s32.totalorder %s56, %s57
    %p71 = scmp.eq.s32.totalorder %s23, 1
    %p72 = por %p70, %p71
    %p74 = scmp.ne.s32.totalorder %s57, %s73
    %p75 = scmp.eq.s32.totalorder %s23, 0
    %p76 = por %p74, %p75
    %s78 = sadd.s32 %s77, 1
    %p81 = scmp.eq.s32.totalorder %s17, 1
    %p82 = scmp.ne.s32.totalorder %s77, %s79
    %p83 = scmp.eq.s32.totalorder %s17, 0
    %p84 = por %p82, %p83
    %p85 = scmp.ne.s32.totalorder %s77, %s79
    %p86 = scmp.eq.s32.totalorder %s22, 1
    %p87 = por %p85, %p86
    %p88 = scmp.ne.s32.totalorder %s79, %s80
    %p89 = scmp.eq.s32.totalorder %s22, 0
    %p90 = por %p88, %p89
    %p91 = scmp.ne.s32.totalorder %s79, %s80
    %p92 = scmp.eq.s32.totalorder %s23, 1
    %p93 = por %p91, %p92
    %p95 = scmp.ne.s32.totalorder %s80, %s94
    %p96 = scmp.eq.s32.totalorder %s23, 0
    %p97 = por %p95, %p96
    %s99 = sadd.s32 %s98, 1
    %p102 = scmp.eq.s32.totalorder %s17, 1
    %p103 = scmp.ne.s32.totalorder %s98, %s100
    %p104 = scmp.eq.s32.totalorder %s17, 0
    %p105 = por %p103, %p104
    %p106 = scmp.ne.s32.totalorder %s98, %s100
    %p107 = scmp.eq.s32.totalorder %s22, 1
    %p108 = por %p106, %p107
    %p109 = scmp.ne.s32.totalorder %s100, %s101
    %p110 = scmp.eq.s32.totalorder %s22, 0
    %p111 = por %p109, %p110
    %p112 = scmp.ne.s32.totalorder %s100, %s101
    %p113 = scmp.eq.s32.totalorder %s23, 1
    %p114 = por %p112, %p113
    %p116 = scmp.ne.s32.totalorder %s101, %s115
    %p117 = scmp.eq.s32.totalorder %s23, 0
    %p118 = por %p116, %p117
    %s120 = sadd.s32 %s119, 1
    %p123 = scmp.eq.s32.totalorder %s17, 1
    %p124 = scmp.ne.s32.totalorder %s119, %s121
    %p125 = scmp.eq.s32.totalorder %s17, 0
    %p126 = por %p124, %p125
    %p127 = scmp.ne.s32.totalorder %s119, %s121
    %p128 = scmp.eq.s32.totalorder %s22, 1
    %p129 = por %p127, %p128
    %p130 = scmp.ne.s32.totalorder %s121, %s122
    %p131 = scmp.eq.s32.totalorder %s22, 0
    %p132 = por %p130, %p131
    %p133 = scmp.ne.s32.totalorder %s121, %s122
    %p134 = scmp.eq.s32.totalorder %s23, 1
    %p135 = por %p133, %p134
    %p137 = scmp.ne.s32.totalorder %s122, %s136
    %p138 = scmp.eq.s32.totalorder %s23, 0
    %p139 = por %p137, %p138
    %s141 = sadd.s32 %s140, 1
    %p144 = scmp.eq.s32.totalorder %s17, 1
    %p145 = scmp.ne.s32.totalorder %s140, %s142
    %p146 = scmp.eq.s32.totalorder %s17, 0
    %p147 = por %p145, %p146
    %p148 = scmp.ne.s32.totalorder %s140, %s142
    %p149 = scmp.eq.s32.totalorder %s22, 1
    %p150 = por %p148, %p149
    %p151 = scmp.ne.s32.totalorder %s142, %s143
    %p152 = scmp.eq.s32.totalorder %s22, 0
    %p153 = por %p151, %p152
    %p154 = scmp.ne.s32.totalorder %s142, %s143
    %p155 = scmp.eq.s32.totalorder %s23, 1
    %p156 = por %p154, %p155
    %p158 = scmp.ne.s32.totalorder %s143, %s157
    %p159 = scmp.eq.s32.totalorder %s23, 0
    %p160 = por %p158, %p159
    %s162 = sadd.s32 %s161, 1
    %p165 = scmp.eq.s32.totalorder %s17, 1
    %p166 = scmp.ne.s32.totalorder %s161, %s163
    %p167 = scmp.eq.s32.totalorder %s17, 0
    %p168 = por %p166, %p167
    %p169 = scmp.ne.s32.totalorder %s161, %s163
    %p170 = scmp.eq.s32.totalorder %s22, 1
    %p171 = por %p169, %p170
    %p172 = scmp.ne.s32.totalorder %s163, %s164
    %p173 = scmp.eq.s32.totalorder %s22, 0
    %p174 = por %p172, %p173
    %p175 = scmp.ne.s32.totalorder %s163, %s164
    %p176 = scmp.eq.s32.totalorder %s23, 1
    %p177 = por %p175, %p176
    %p179 = scmp.ne.s32.totalorder %s164, %s178
    %p180 = scmp.eq.s32.totalorder %s23, 0
    %p181 = por %p179, %p180
    %s183 = sadd.s32 %s182, 1
    %p186 = scmp.eq.s32.totalorder %s17, 1
    %p187 = scmp.ne.s32.totalorder %s182, %s184
    %p188 = scmp.eq.s32.totalorder %s17, 0
    %p189 = por %p187, %p188
    %p190 = scmp.ne.s32.totalorder %s182, %s184
    %p191 = scmp.eq.s32.totalorder %s22, 1
    %p192 = por %p190, %p191
    %p193 = scmp.ne.s32.totalorder %s184, %s185
    %p194 = scmp.eq.s32.totalorder %s22, 0
    %p195 = por %p193, %p194
    %p196 = scmp.ne.s32.totalorder %s184, %s185
    %p197 = scmp.eq.s32.totalorder %s23, 1
    %p198 = por %p196, %p197
    %p200 = scmp.ne.s32.totalorder %s185, %s199
    %p201 = scmp.eq.s32.totalorder %s23, 0
    %p202 = por %p200, %p201
    %s204 = sadd.s32 %s203, 1
    %p207 = scmp.eq.s32.totalorder %s17, 1
    %p208 = scmp.ne.s32.totalorder %s203, %s205
    %p209 = scmp.eq.s32.totalorder %s17, 0
    %p210 = por %p208, %p209
    %p211 = scmp.ne.s32.totalorder %s203, %s205
    %p212 = scmp.eq.s32.totalorder %s22, 1
    %p213 = por %p211, %p212
    %p214 = scmp.ne.s32.totalorder %s205, %s206
    %p215 = scmp.eq.s32.totalorder %s22, 0
    %p216 = por %p214, %p215
    %p217 = scmp.ne.s32.totalorder %s205, %s206
    %p218 = scmp.eq.s32.totalorder %s23, 1
    %p219 = por %p217, %p218
    %p221 = scmp.ne.s32.totalorder %s206, %s220
    %p222 = scmp.eq.s32.totalorder %s23, 0
    %p223 = por %p221, %p222
    %s224 = ssub.s32 %s17, %s24
    %p225 = scmp.eq.s32.totalorder %s224, 0
    %s227 = sadd.s32 %s226, 1
    %s228 = scalar_select %p225, %s226, %s227
    %p231 = pneg %p225
    %p232 = scmp.eq.s32.totalorder %s17, 1
    %p233 = por %p231, %p232
    %p234 = scmp.ne.s32.totalorder %s226, %s229
    %p235 = scmp.eq.s32.totalorder %s17, 0
    %p236 = por %p234, %p235
    %p237 = scmp.ne.s32.totalorder %s226, %s229
    %p238 = scmp.eq.s32.totalorder %s22, 1
    %p239 = por %p237, %p238
    %p240 = scmp.ne.s32.totalorder %s229, %s230
    %p241 = scmp.eq.s32.totalorder %s22, 0
    %p242 = por %p240, %p241
    %p243 = scmp.ne.s32.totalorder %s229, %s230
    %p244 = scmp.eq.s32.totalorder %s23, 1
    %p245 = por %p243, %p244
    %p247 = scmp.ne.s32.totalorder %s230, %s246
    %p248 = scmp.eq.s32.totalorder %s23, 0
    %p249 = por %p247, %p248
    %p250 = scmp.le.s32.totalorder 1, %s17
    %p251 = scmp.lt.s32.totalorder %s17, 3
    %p252 = pnand %p250, %p251
    %p253 = pneg %p252
    // Predicated region
    $region9: #{tpu_custom_call.1} parent=5 // pred_check
      _
    $region10: #{tpu_custom_call.1} parent=5 // pred_check_branch
      %255 = sbr.rel (%p252) target = $region12
    $region11: #{tpu_custom_call.1} parent=5 // pred_region
      %s256 = ssub.s32 %s17, 1
      // Predicated region
      $region13: #{tpu_custom_call.1} parent=11 // pred_check
        %p257 = pneg %p90
      $region14: #{tpu_custom_call.1} parent=11 // pred_check_branch
        %259 = sbr.rel (%p257) target = $region16
      $region15: #{tpu_custom_call.1} parent=11 // pred_region
        _
      $region16: #{tpu_custom_call.1} parent=11 // pred_fallthru
        _
      // Predicated region
      $region17: #{tpu_custom_call.1} parent=11 // pred_check
        %p260 = pneg %p111
      $region18: #{tpu_custom_call.1} parent=11 // pred_check_branch
        %262 = sbr.rel (%p260) target = $region20
      $region19: #{tpu_custom_call.1} parent=11 // pred_region
        _
      $region20: #{tpu_custom_call.1} parent=11 // pred_fallthru
        _
      // Predicated region
      $region21: #{tpu_custom_call.1} parent=11 // pred_check
        %p263 = pneg %p132
      $region22: #{tpu_custom_call.1} parent=11 // pred_check_branch
        %265 = sbr.rel (%p263) target = $region24
      $region23: #{tpu_custom_call.1} parent=11 // pred_region
        _
      $region24: #{tpu_custom_call.1} parent=11 // pred_fallthru
        _
      // Predicated region
      $region25: #{tpu_custom_call.1} parent=11 // pred_check
        %p266 = pneg %p153
      $region26: #{tpu_custom_call.1} parent=11 // pred_check_branch
        %268 = sbr.rel (%p266) target = $region28
      $region27: #{tpu_custom_call.1} parent=11 // pred_region
        _
      $region28: #{tpu_custom_call.1} parent=11 // pred_fallthru
        _
      // Predicated region
      $region29: #{tpu_custom_call.1} parent=11 // pred_check
        %p269 = pneg %p174
      $region30: #{tpu_custom_call.1} parent=11 // pred_check_branch
        %271 = sbr.rel (%p269) target = $region32
      $region31: #{tpu_custom_call.1} parent=11 // pred_region
        _
      $region32: #{tpu_custom_call.1} parent=11 // pred_fallthru
        _
      // Predicated region
      $region33: #{tpu_custom_call.1} parent=11 // pred_check
        %p272 = pneg %p195
      $region34: #{tpu_custom_call.1} parent=11 // pred_check_branch
        %274 = sbr.rel (%p272) target = $region36
      $region35: #{tpu_custom_call.1} parent=11 // pred_region
        _
      $region36: #{tpu_custom_call.1} parent=11 // pred_fallthru
        _
      // Predicated region
      $region37: #{tpu_custom_call.1} parent=11 // pred_check
        %p275 = pneg %p216
      $region38: #{tpu_custom_call.1} parent=11 // pred_check_branch
        %277 = sbr.rel (%p275) target = $region40
      $region39: #{tpu_custom_call.1} parent=11 // pred_region
        _
      $region40: #{tpu_custom_call.1} parent=11 // pred_fallthru
        _
    $region12: #{tpu_custom_call.1} parent=5 // pred_fallthru
      _
    %p278 = scmp.lt.s32.totalorder %s17, 2
    // Predicated region
    $region41: #{tpu_custom_call.1} parent=5 // pred_check
      %p279 = pneg %p278
    $region42: #{tpu_custom_call.1} parent=5 // pred_check_branch
      %281 = sbr.rel (%p279) target = $region44
    $region43: #{tpu_custom_call.1} parent=5 // pred_region
      // Predicated region
      $region45: #{tpu_custom_call.1} parent=43 // pred_check
        %p282 = pneg %p37
      $region46: #{tpu_custom_call.1} parent=43 // pred_check_branch
        %284 = sbr.rel (%p282) target = $region48
      $region47: #{tpu_custom_call.1} parent=43 // pred_region
        %s285 = smul.u32 16, %s17
        %p286 = scmp.lt.s32.totalorder %s285, 31
        %s287 = scalar_select %p286, %s285, 31
        %s288 = smul.addr %s287, 8
        %s289 = scalar_lea.vmem %s0, %s288
        %s290 = smul.u32 16, %s17
      $region48: #{tpu_custom_call.1} parent=43 // pred_fallthru
        _
      // Predicated region
      $region49: #{tpu_custom_call.1} parent=43 // pred_check
        %p291 = pneg %p63
      $region50: #{tpu_custom_call.1} parent=43 // pred_check_branch
        %293 = sbr.rel (%p291) target = $region52
      $region51: #{tpu_custom_call.1} parent=43 // pred_region
        %s294 = smul.u32 16, %s17
        %p295 = scmp.lt.s32.totalorder %s294, 31
        %s296 = scalar_select %p295, %s294, 31
        %s297 = smul.addr %s296, 8
        %s298 = scalar_lea.vmem %s1, %s297
        %s299 = smul.u32 16, %s17
      $region52: #{tpu_custom_call.1} parent=43 // pred_fallthru
        _
    $region44: #{tpu_custom_call.1} parent=5 // pred_fallthru
      _
    %p300 = scmp.le.s32.totalorder 1, %s17
    %p301 = scmp.lt.s32.totalorder %s17, 3
    %p302 = pnand %p300, %p301
    %p303 = pneg %p302
    // Predicated region
    $region53: #{tpu_custom_call.1} parent=5 // pred_check
      _
    $region54: #{tpu_custom_call.1} parent=5 // pred_check_branch
      %305 = sbr.rel (%p302) target = $region56
    $region55: #{tpu_custom_call.1} parent=5 // pred_region
      %s306 = ssub.s32 %s17, 1
      %s307 = smul.u32 16, %s22
      %p308 = scmp.lt.s32.totalorder %s307, 31
      %s309 = scalar_select %p308, %s307, 31
      %s310 = smul.addr %s309, 8
      %s311 = scalar_lea.vmem %s0, %s310
      %p312 = pneg %p43
      %p313 = pneg %p40
      %s314 = smul.u32 16, %s22
      %p315 = scmp.lt.s32.totalorder %s314, 31
      %s316 = scalar_select %p315, %s314, 31
      %s317 = smul.addr %s316, 8
      %s318 = scalar_lea.vmem %s1, %s317
      %p319 = pneg %p69
      %p320 = pneg %p66
      %p321 = pneg %p90
      %p322 = pneg %p87
      %p323 = pneg %p111
      %p324 = pneg %p108
      %p325 = pneg %p132
      %p326 = pneg %p129
      %p327 = pneg %p153
      %p328 = pneg %p150
      %p329 = pneg %p174
      %p330 = pneg %p171
      %p331 = pneg %p195
      %p332 = pneg %p192
      %p333 = pneg %p216
      %p334 = pneg %p213
      %p335 = pneg %p242
      %p336 = pneg %p239
      %s337 = smul.u32 16, %s22
      %p338 = scmp.lt.s32.totalorder %s337, 31
      %s339 = scalar_select %p338, %s337, 31
      %s340 = smul.addr %s339, 8
      %s341 = scalar_lea.vmem %s9, %s340
      %s342 = smul.u32 16, %s22
      %p343 = scmp.lt.s32.totalorder %s342, 31
      %s344 = scalar_select %p343, %s342, 31
      %s345 = smul.addr %s344, 8
      %s346 = scalar_lea.vmem %s0, %s345
      %s347 = smul.u32 16, %s22
      %s348 = smul.u32 16, %s22
      %p349 = scmp.lt.s32.totalorder %s348, 31
      %s350 = scalar_select %p349, %s348, 31
      %s351 = smul.addr %s350, 8
      %s352 = scalar_lea.vmem %s1, %s351
      %s353 = smul.u32 16, %s22
      %s354 = smul.u32 16, %s22
      %p355 = scmp.lt.s32.totalorder %s354, 31
      %s356 = scalar_select %p355, %s354, 31
      %s357 = smul.addr %s356, 8
      %s358 = scalar_lea.vmem %s9, %s357
      %s359 = smul.u32 16, %s22
      %v361 = vld [vmem:[%s346] sm:$0xff]
      %v362 = vld [vmem:[%s346 + $0x8] sm:$0xff]
      %v363 = vld [vmem:[%s346 + $0x10] sm:$0xff]
      %v364 = vld [vmem:[%s346 + $0x18] sm:$0xff]
      %v365 = vld [vmem:[%s346 + $0x20] sm:$0xff]
      %v366 = vld [vmem:[%s346 + $0x28] sm:$0xff]
      %v367 = vld [vmem:[%s346 + $0x30] sm:$0xff]
      %v368 = vld [vmem:[%s346 + $0x38] sm:$0xff]
      %v369 = vld [vmem:[%s346 + $0x40] sm:$0xff]
      %v370 = vld [vmem:[%s346 + $0x48] sm:$0xff]
      %v371 = vld [vmem:[%s346 + $0x50] sm:$0xff]
      %v372 = vld [vmem:[%s346 + $0x58] sm:$0xff]
      %v373 = vld [vmem:[%s346 + $0x60] sm:$0xff]
      %v374 = vld [vmem:[%s346 + $0x68] sm:$0xff]
      %v375 = vld [vmem:[%s346 + $0x70] sm:$0xff]
      %v376 = vld [vmem:[%s346 + $0x78] sm:$0xff]
      %v377 = vpack.c.bf16 %v362, %v361
      %v378 = vpack.c.bf16 %v364, %v363
      %v379 = vpack.c.bf16 %v366, %v365
      %v380 = vpack.c.bf16 %v368, %v367
      %v381 = vpack.c.bf16 %v370, %v369
      %v382 = vpack.c.bf16 %v372, %v371
      %v383 = vpack.c.bf16 %v374, %v373
      %v384 = vpack.c.bf16 %v376, %v375
      %v385 = vld [vmem:[%s352] sm:$0xff]
      %v386 = vld [vmem:[%s352 + $0x8] sm:$0xff]
      %v387 = vld [vmem:[%s352 + $0x10] sm:$0xff]
      %v388 = vld [vmem:[%s352 + $0x18] sm:$0xff]
      %v389 = vld [vmem:[%s352 + $0x20] sm:$0xff]
      %v390 = vld [vmem:[%s352 + $0x28] sm:$0xff]
      %v391 = vld [vmem:[%s352 + $0x30] sm:$0xff]
      %v392 = vld [vmem:[%s352 + $0x38] sm:$0xff]
      %v393 = vld [vmem:[%s352 + $0x40] sm:$0xff]
      %v394 = vld [vmem:[%s352 + $0x48] sm:$0xff]
      %v395 = vld [vmem:[%s352 + $0x50] sm:$0xff]
      %v396 = vld [vmem:[%s352 + $0x58] sm:$0xff]
      %v397 = vld [vmem:[%s352 + $0x60] sm:$0xff]
      %v398 = vld [vmem:[%s352 + $0x68] sm:$0xff]
      %v399 = vld [vmem:[%s352 + $0x70] sm:$0xff]
      %v400 = vld [vmem:[%s352 + $0x78] sm:$0xff]
      %v401 = vpack.c.bf16 %v386, %v385
      %v402 = vpack.c.bf16 %v388, %v387
      %v403 = vpack.c.bf16 %v390, %v389
      %v404 = vpack.c.bf16 %v392, %v391
      %v405 = vpack.c.bf16 %v394, %v393
      %v406 = vpack.c.bf16 %v396, %v395
      %v407 = vpack.c.bf16 %v398, %v397
      %v408 = vpack.c.bf16 %v400, %v399
      %v409 = vld [vmem:[%s2] sm:$0xf]
      %v410 = vld [vmem:[%s2 + $0x4] sm:$0xf]
      %v411 = vld [vmem:[%s2 + $0x8] sm:$0xf]
      %v412 = vld [vmem:[%s3] sm:$0xf]
      %vm413 = vcmask 64512
      %v415 = vsel %vm413, %v401, 0
      %v418 = vsel %vm413, %v402, 0
      %v421 = vsel %vm413, %v403, 0
      %v424 = vsel %vm413, %v404, 0
      %v427 = vsel %vm413, %v405, 0
      %v430 = vsel %vm413, %v406, 0
      %v433 = vsel %vm413, %v407, 0
      %v436 = vsel %vm413, %v408, 0
      %vm438 = vcmask 1043456
      %v440 = vsel %vm438, %v412, 0
      %442 = vmatprep.subr.bf16.mxu0 0
      %443 = vmatpush1.bf16.msra.mxu0 %v440
      %444 = vmatprep.subr.bf16.mxu0 0
      %445 = vmatpush1.bf16.msra.mxu0 0
      %446 = vmatprep.subr.bf16.mxu0 0
      %447 = vmatpush1.bf16.msra.mxu0 0
      %448 = vmatprep.subr.bf16.mxu0 0
      %449 = vmatpush1.bf16.msra.mxu0 0
      %450 = vmatprep.subr.bf16.mxu0 0
      %451 = vmatpush1.bf16.msra.mxu0 0
      %452 = vmatprep.subr.bf16.mxu0 0
      %453 = vmatpush1.bf16.msra.mxu0 0
      %454 = vmatprep.subr.bf16.mxu0 0
      %455 = vmatpush1.bf16.msra.mxu0 0
      %456 = vmatprep.subr.bf16.mxu0 0
      %457 = vmatpush1.bf16.msra.mxu0 0
      %458 = vmatprep.subr.bf16.mxu0 0
      %459 = vmatpush1.bf16.msra.mxu0 0
      %460 = vmatprep.subr.bf16.mxu0 0
      %461 = vmatpush1.bf16.msra.mxu0 0
      %462 = vmatprep.subr.bf16.mxu0 0
      %463 = vmatpush1.bf16.msra.mxu0 0
      %464 = vmatprep.subr.bf16.mxu0 0
      %465 = vmatpush1.bf16.msra.mxu0 0
      %466 = vmatprep.subr.bf16.mxu0 0
      %467 = vmatpush1.bf16.msra.mxu0 0
      %468 = vmatprep.subr.bf16.mxu0 0
      %469 = vmatpush1.bf16.msra.mxu0 0
      %470 = vmatprep.subr.bf16.mxu0 0
      %471 = vmatpush1.bf16.msra.mxu0 0
      %472 = vmatprep.subr.bf16.mxu0 0
      %473 = vmatpush1.bf16.msra.mxu0 0
      %474 = vmatprep.mubr.bf16.mxu0 0
      %475 = vmatmul.mubr.bf16.gmra.mrb[0].mxu0 %v415
      %v476 = vpop.f32.mrb[0].mxu0
      %v477 = vadd.f32 0.0, %v476
      %v478 = vpop.f32.mrb[0].mxu0
      %v479 = vpop.f32.mrb[0].mxu0
      %v480 = vadd.f32 0.0, %v479
      %v481 = vpop.f32.mrb[0].mxu0
      %482 = vmatprep.mubr.bf16.mxu0 0
      %483 = vmatmul.mubr.bf16.gmra.mrb[0].mxu0 %v418
      %v484 = vpop.f32.mrb[0].mxu0
      %v485 = vadd.f32 0.0, %v484
      %v486 = vpop.f32.mrb[0].mxu0
      %v487 = vpop.f32.mrb[0].mxu0
      %v488 = vadd.f32 0.0, %v487
      %v489 = vpop.f32.mrb[0].mxu0
      %490 = vmatprep.mubr.bf16.mxu0 0
      %491 = vmatmul.mubr.bf16.gmra.mrb[0].mxu0 %v421
      %v492 = vpop.f32.mrb[0].mxu0
      %v493 = vadd.f32 0.0, %v492
      %v494 = vpop.f32.mrb[0].mxu0
      %v495 = vpop.f32.mrb[0].mxu0
      %v496 = vadd.f32 0.0, %v495
      %v497 = vpop.f32.mrb[0].mxu0
      %498 = vmatprep.mubr.bf16.mxu0 0
      %499 = vmatmul.mubr.bf16.gmra.mrb[0].mxu0 %v424
      %v500 = vpop.f32.mrb[0].mxu0
      %v501 = vadd.f32 0.0, %v500
      %v502 = vpop.f32.mrb[0].mxu0
      %v503 = vpop.f32.mrb[0].mxu0
      %v504 = vadd.f32 0.0, %v503
      %v505 = vpop.f32.mrb[0].mxu0
      %506 = vmatprep.mubr.bf16.mxu0 0
      %507 = vmatmul.mubr.bf16.gmra.mrb[0].mxu0 %v427
      %v508 = vpop.f32.mrb[0].mxu0
      %v509 = vadd.f32 0.0, %v508
      %v510 = vpop.f32.mrb[0].mxu0
      %v511 = vpop.f32.mrb[0].mxu0
      %v512 = vadd.f32 0.0, %v511
      %v513 = vpop.f32.mrb[0].mxu0
      %514 = vmatprep.mubr.bf16.mxu0 0
      %515 = vmatmul.mubr.bf16.gmra.mrb[0].mxu0 %v430
      %v516 = vpop.f32.mrb[0].mxu0
      %v517 = vadd.f32 0.0, %v516
      %v518 = vpop.f32.mrb[0].mxu0
      %v519 = vpop.f32.mrb[0].mxu0
      %v520 = vadd.f32 0.0, %v519
      %v521 = vpop.f32.mrb[0].mxu0
      %522 = vmatprep.mubr.bf16.mxu0 0
      %523 = vmatmul.mubr.bf16.gmra.mrb[0].mxu0 %v433
      %v524 = vpop.f32.mrb[0].mxu0
      %v525 = vadd.f32 0.0, %v524
      %v526 = vpop.f32.mrb[0].mxu0
      %v527 = vpop.f32.mrb[0].mxu0
      %v528 = vadd.f32 0.0, %v527
      %v529 = vpop.f32.mrb[0].mxu0
      %530 = vmatprep.mubr.bf16.mxu0 0
      %531 = vmatmul.mubr.bf16.gmra.mrb[0].mxu0 %v436
      %v532 = vpop.f32.mrb[0].mxu0
      %v533 = vadd.f32 0.0, %v532
      %v534 = vpop.f32.mrb[0].mxu0
      %v535 = vpop.f32.mrb[0].mxu0
      %v536 = vadd.f32 0.0, %v535
      %v537 = vpop.f32.mrb[0].mxu0
      %538 = vdwg.mxu0
      %v542 = vunpack.c.l.b16 %v409
      %v543 = vunpack.c.l.b16 %v410
      %v544 = vunpack.c.l.b16 %v411
      %v545 = vpack.c.b16 %v543, %v542
      %v546 = vpack.c.b16 %v544, %v544
      %vm548 = vcmask 195584
      %v550 = vsel %vm548, %v377, 0
      %v553 = vsel %vm548, %v378, 0
      %v556 = vsel %vm548, %v379, 0
      %v559 = vsel %vm548, %v380, 0
      %v562 = vsel %vm548, %v381, 0
      %v565 = vsel %vm548, %v382, 0
      %v568 = vsel %vm548, %v383, 0
      %v571 = vsel %vm548, %v384, 0
      %v574 = vsel %vm438, %v546, 0
      %576 = vmatprep.subr.bf16.mxu0 0
      %577 = vmatpush1.bf16.msra.mxu0 %v545
      %578 = vmatprep.subr.bf16.mxu0 0
      %579 = vmatpush1.bf16.msra.mxu0 %v574
      %580 = vmatprep.subr.bf16.mxu0 0
      %581 = vmatpush1.bf16.msra.mxu0 0
      %582 = vmatprep.subr.bf16.mxu0 0
      %583 = vmatpush1.bf16.msra.mxu0 0
      %584 = vmatprep.subr.bf16.mxu0 0
      %585 = vmatpush1.bf16.msra.mxu0 0
      %586 = vmatprep.subr.bf16.mxu0 0
      %587 = vmatpush1.bf16.msra.mxu0 0
      %588 = vmatprep.subr.bf16.mxu0 0
      %589 = vmatpush1.bf16.msra.mxu0 0
      %590 = vmatprep.subr.bf16.mxu0 0
      %591 = vmatpush1.bf16.msra.mxu0 0
      %592 = vmatprep.subr.bf16.mxu0 0
      %593 = vmatpush1.bf16.msra.mxu0 0
      %594 = vmatprep.subr.bf16.mxu0 0
      %595 = vmatpush1.bf16.msra.mxu0 0
      %596 = vmatprep.subr.bf16.mxu0 0
      %597 = vmatpush1.bf16.msra.mxu0 0
      %598 = vmatprep.subr.bf16.mxu0 0
      %599 = vmatpush1.bf16.msra.mxu0 0
      %600 = vmatprep.subr.bf16.mxu0 0
      %601 = vmatpush1.bf16.msra.mxu0 0
      %602 = vmatprep.subr.bf16.mxu0 0
      %603 = vmatpush1.bf16.msra.mxu0 0
      %604 = vmatprep.subr.bf16.mxu0 0
      %605 = vmatpush1.bf16.msra.mxu0 0
      %606 = vmatprep.subr.bf16.mxu0 0
      %607 = vmatpush1.bf16.msra.mxu0 0
      %608 = vmatprep.mubr.bf16.mxu0 0
      %609 = vmatmul.mubr.bf16.gmra.mrb[0].mxu0 %v550
      %v610 = vpop.f32.mrb[0].mxu0
      %v611 = vadd.f32 %v477, %v610
      %v612 = vpop.f32.mrb[0].mxu0
      %v613 = vpop.f32.mrb[0].mxu0
      %v614 = vadd.f32 %v480, %v613
      %v615 = vpop.f32.mrb[0].mxu0
      %616 = vmatprep.mubr.bf16.mxu0 0
      %617 = vmatmul.mubr.bf16.gmra.mrb[0].mxu0 %v553
      %v618 = vpop.f32.mrb[0].mxu0
      %v619 = vadd.f32 %v485, %v618
      %v620 = vpop.f32.mrb[0].mxu0
      %v621 = vpop.f32.mrb[0].mxu0
      %v622 = vadd.f32 %v488, %v621
      %v623 = vpop.f32.mrb[0].mxu0
      %624 = vmatprep.mubr.bf16.mxu0 0
      %625 = vmatmul.mubr.bf16.gmra.mrb[0].mxu0 %v556
      %v626 = vpop.f32.mrb[0].mxu0
      %v627 = vadd.f32 %v493, %v626
      %v628 = vpop.f32.mrb[0].mxu0
      %v629 = vpop.f32.mrb[0].mxu0
      %v630 = vadd.f32 %v496, %v629
      %v631 = vpop.f32.mrb[0].mxu0
      %632 = vmatprep.mubr.bf16.mxu0 0
      %633 = vmatmul.mubr.bf16.gmra.mrb[0].mxu0 %v559
      %v634 = vpop.f32.mrb[0].mxu0
      %v635 = vadd.f32 %v501, %v634
      %v636 = vpop.f32.mrb[0].mxu0
      %v637 = vpop.f32.mrb[0].mxu0
      %v638 = vadd.f32 %v504, %v637
      %v639 = vpop.f32.mrb[0].mxu0
      %640 = vmatprep.mubr.bf16.mxu0 0
      %641 = vmatmul.mubr.bf16.gmra.mrb[0].mxu0 %v562
      %v642 = vpop.f32.mrb[0].mxu0
      %v643 = vadd.f32 %v509, %v642
      %v644 = vpop.f32.mrb[0].mxu0
      %v645 = vpop.f32.mrb[0].mxu0
      %v646 = vadd.f32 %v512, %v645
      %v647 = vpop.f32.mrb[0].mxu0
      %648 = vmatprep.mubr.bf16.mxu0 0
      %649 = vmatmul.mubr.bf16.gmra.mrb[0].mxu0 %v565
      %v650 = vpop.f32.mrb[0].mxu0
      %v651 = vadd.f32 %v517, %v650
      %v652 = vpop.f32.mrb[0].mxu0
      %v653 = vpop.f32.mrb[0].mxu0
      %v654 = vadd.f32 %v520, %v653
      %v655 = vpop.f32.mrb[0].mxu0
      %656 = vmatprep.mubr.bf16.mxu0 0
      %657 = vmatmul.mubr.bf16.gmra.mrb[0].mxu0 %v568
      %v658 = vpop.f32.mrb[0].mxu0
      %v659 = vadd.f32 %v525, %v658
      %v660 = vpop.f32.mrb[0].mxu0
      %v661 = vpop.f32.mrb[0].mxu0
      %v662 = vadd.f32 %v528, %v661
      %v663 = vpop.f32.mrb[0].mxu0
      %664 = vmatprep.mubr.bf16.mxu0 0
      %665 = vmatmul.mubr.bf16.gmra.mrb[0].mxu0 %v571
      %v666 = vpop.f32.mrb[0].mxu0
      %v667 = vadd.f32 %v533, %v666
      %v668 = vpop.f32.mrb[0].mxu0
      %v669 = vpop.f32.mrb[0].mxu0
      %v670 = vadd.f32 %v536, %v669
      %v671 = vpop.f32.mrb[0].mxu0
      %672 = vdwg.mxu0
      %v673 = vld [vmem:[%s4] sm:$0x1]
      %v675 = vlaneseq
      %v676 = vshrl.u32 %v675, 7
      %v677 = vsub.s32 0, %v676
      %v678 = vrot.slane %v673, %v677
      %v680 = vadd.f32 %v611, %v678
      %v681 = vadd.f32 %v614, %v678
      %v682 = vadd.f32 %v619, %v678
      %v683 = vadd.f32 %v622, %v678
      %v684 = vadd.f32 %v627, %v678
      %v685 = vadd.f32 %v630, %v678
      %v686 = vadd.f32 %v635, %v678
      %v687 = vadd.f32 %v638, %v678
      %v688 = vadd.f32 %v643, %v678
      %v689 = vadd.f32 %v646, %v678
      %v690 = vadd.f32 %v651, %v678
      %v691 = vadd.f32 %v654, %v678
      %v692 = vadd.f32 %v659, %v678
      %v693 = vadd.f32 %v662, %v678
      %v694 = vadd.f32 %v667, %v678
      %v695 = vadd.f32 %v670, %v678
      %v696 = vmax.f32 %v680, 0.0
      %v697 = vmax.f32 %v681, 0.0
      %v698 = vmax.f32 %v682, 0.0
      %v699 = vmax.f32 %v683, 0.0
      %v700 = vmax.f32 %v684, 0.0
      %v701 = vmax.f32 %v685, 0.0
      %v702 = vmax.f32 %v686, 0.0
      %v703 = vmax.f32 %v687, 0.0
      %v704 = vmax.f32 %v688, 0.0
      %v705 = vmax.f32 %v689, 0.0
      %v706 = vmax.f32 %v690, 0.0
      %v707 = vmax.f32 %v691, 0.0
      %v708 = vmax.f32 %v692, 0.0
      %v709 = vmax.f32 %v693, 0.0
      %v710 = vmax.f32 %v694, 0.0
      %v711 = vmax.f32 %v695, 0.0
      %v712 = vpack.c.bf16 %v697, %v696
      %v713 = vpack.c.bf16 %v699, %v698
      %v714 = vpack.c.bf16 %v701, %v700
      %v715 = vpack.c.bf16 %v703, %v702
      %v716 = vpack.c.bf16 %v705, %v704
      %v717 = vpack.c.bf16 %v707, %v706
      %v718 = vpack.c.bf16 %v709, %v708
      %v719 = vpack.c.bf16 %v711, %v710
      %v720 = vld [vmem:[%s5] sm:$0xf]
      %v721 = vld [vmem:[%s5 + $0x4] sm:$0xf]
      %v722 = vld [vmem:[%s5 + $0x8] sm:$0xf]
      %v723 = vld [vmem:[%s5 + $0xc] sm:$0xf]
      %v724 = vld [vmem:[%s5 + $0x10] sm:$0xf]
      %v725 = vld [vmem:[%s5 + $0x14] sm:$0xf]
      %v726 = vld [vmem:[%s5 + $0x18] sm:$0xf]
      %v727 = vld [vmem:[%s5 + $0x1c] sm:$0xf]
      %v728 = vld [vmem:[%s5 + $0x20] sm:$0xf]
      %v729 = vld [vmem:[%s5 + $0x24] sm:$0xf]
      %v730 = vld [vmem:[%s5 + $0x28] sm:$0xf]
      %v731 = vld [vmem:[%s5 + $0x2c] sm:$0xf]
      %v732 = vld [vmem:[%s5 + $0x30] sm:$0xf]
      %v733 = vld [vmem:[%s5 + $0x34] sm:$0xf]
      %v734 = vld [vmem:[%s5 + $0x38] sm:$0xf]
      %v735 = vld [vmem:[%s5 + $0x3c] sm:$0xf]
      %v736 = vld [vmem:[%s6] sm:$0x1]
      %v738 = vlaneseq
      %v739 = vshrl.u32 %v738, 7
      %v740 = vsub.s32 0, %v739
      %v741 = vrot.slane %v736, %v740
      %v759 = vunpack.c.l.b16 %v720
      %v760 = vunpack.c.l.b16 %v721
      %v761 = vunpack.c.l.b16 %v722
      %v762 = vunpack.c.l.b16 %v723
      %v763 = vunpack.c.l.b16 %v724
      %v764 = vunpack.c.l.b16 %v725
      %v765 = vunpack.c.l.b16 %v726
      %v766 = vunpack.c.l.b16 %v727
      %v767 = vunpack.c.l.b16 %v728
      %v768 = vunpack.c.l.b16 %v729
      %v769 = vunpack.c.l.b16 %v730
      %v770 = vunpack.c.l.b16 %v731
      %v771 = vunpack.c.l.b16 %v732
      %v772 = vunpack.c.l.b16 %v733
      %v773 = vunpack.c.l.b16 %v734
      %v774 = vunpack.c.l.b16 %v735
      %v775 = vpack.c.b16 %v760, %v759
      %v776 = vpack.c.b16 %v762, %v761
      %v777 = vpack.c.b16 %v764, %v763
      %v778 = vpack.c.b16 %v766, %v765
      %v779 = vpack.c.b16 %v768, %v767
      %v780 = vpack.c.b16 %v770, %v769
      %v781 = vpack.c.b16 %v772, %v771
      %v782 = vpack.c.b16 %v774, %v773
      %791 = vmatprep.subr.bf16.mxu0 0
      %792 = vmatpush1.bf16.msra.mxu0 %v775
      %793 = vmatprep.subr.bf16.mxu0 0
      %794 = vmatpush1.bf16.msra.mxu0 %v776
      %795 = vmatprep.subr.bf16.mxu0 0
      %796 = vmatpush1.bf16.msra.mxu0 %v777
      %797 = vmatprep.subr.bf16.mxu0 0
      %798 = vmatpush1.bf16.msra.mxu0 %v778
      %799 = vmatprep.subr.bf16.mxu0 0
      %800 = vmatpush1.bf16.msra.mxu0 %v779
      %801 = vmatprep.subr.bf16.mxu0 0
      %802 = vmatpush1.bf16.msra.mxu0 %v780
      %803 = vmatprep.subr.bf16.mxu0 0
      %804 = vmatpush1.bf16.msra.mxu0 %v781
      %805 = vmatprep.subr.bf16.mxu0 0
      %806 = vmatpush1.bf16.msra.mxu0 %v782
      %807 = vmatprep.subr.bf16.mxu0 0
      %808 = vmatpush1.bf16.msra.mxu0 0
      %809 = vmatprep.subr.bf16.mxu0 0
      %810 = vmatpush1.bf16.msra.mxu0 0
      %811 = vmatprep.subr.bf16.mxu0 0
      %812 = vmatpush1.bf16.msra.mxu0 0
      %813 = vmatprep.subr.bf16.mxu0 0
      %814 = vmatpush1.bf16.msra.mxu0 0
      %815 = vmatprep.subr.bf16.mxu0 0
      %816 = vmatpush1.bf16.msra.mxu0 0
      %817 = vmatprep.subr.bf16.mxu0 0
      %818 = vmatpush1.bf16.msra.mxu0 0
      %819 = vmatprep.subr.bf16.mxu0 0
      %820 = vmatpush1.bf16.msra.mxu0 0
      %821 = vmatprep.subr.bf16.mxu0 0
      %822 = vmatpush1.bf16.msra.mxu0 0
      %823 = vmatprep.mubr.bf16.mxu0 0
      %824 = vmatmul.mubr.bf16.gmra.mrb[0].mxu0 %v712
      %v825 = vpop.f32.mrb[0].mxu0
      %v826 = vadd.f32 %v741, %v825
      %v827 = vpop.f32.mrb[0].mxu0
      %v828 = vpop.f32.mrb[0].mxu0
      %v829 = vadd.f32 %v741, %v828
      %v830 = vpop.f32.mrb[0].mxu0
      %831 = vmatprep.mubr.bf16.mxu0 0
      %832 = vmatmul.mubr.bf16.gmra.mrb[0].mxu0 %v713
      %v833 = vpop.f32.mrb[0].mxu0
      %v834 = vadd.f32 %v741, %v833
      %v835 = vpop.f32.mrb[0].mxu0
      %v836 = vpop.f32.mrb[0].mxu0
      %v837 = vadd.f32 %v741, %v836
      %v838 = vpop.f32.mrb[0].mxu0
      %839 = vmatprep.mubr.bf16.mxu0 0
      %840 = vmatmul.mubr.bf16.gmra.mrb[0].mxu0 %v714
      %v841 = vpop.f32.mrb[0].mxu0
      %v842 = vadd.f32 %v741, %v841
      %v843 = vpop.f32.mrb[0].mxu0
      %v844 = vpop.f32.mrb[0].mxu0
      %v845 = vadd.f32 %v741, %v844
      %v846 = vpop.f32.mrb[0].mxu0
      %847 = vmatprep.mubr.bf16.mxu0 0
      %848 = vmatmul.mubr.bf16.gmra.mrb[0].mxu0 %v715
      %v849 = vpop.f32.mrb[0].mxu0
      %v850 = vadd.f32 %v741, %v849
      %v851 = vpop.f32.mrb[0].mxu0
      %v852 = vpop.f32.mrb[0].mxu0
      %v853 = vadd.f32 %v741, %v852
      %v854 = vpop.f32.mrb[0].mxu0
      %855 = vmatprep.mubr.bf16.mxu0 0
      %856 = vmatmul.mubr.bf16.gmra.mrb[0].mxu0 %v716
      %v857 = vpop.f32.mrb[0].mxu0
      %v858 = vadd.f32 %v741, %v857
      %v859 = vpop.f32.mrb[0].mxu0
      %v860 = vpop.f32.mrb[0].mxu0
      %v861 = vadd.f32 %v741, %v860
      %v862 = vpop.f32.mrb[0].mxu0
      %863 = vmatprep.mubr.bf16.mxu0 0
      %864 = vmatmul.mubr.bf16.gmra.mrb[0].mxu0 %v717
      %v865 = vpop.f32.mrb[0].mxu0
      %v866 = vadd.f32 %v741, %v865
      %v867 = vpop.f32.mrb[0].mxu0
      %v868 = vpop.f32.mrb[0].mxu0
      %v869 = vadd.f32 %v741, %v868
      %v870 = vpop.f32.mrb[0].mxu0
      %871 = vmatprep.mubr.bf16.mxu0 0
      %872 = vmatmul.mubr.bf16.gmra.mrb[0].mxu0 %v718
      %v873 = vpop.f32.mrb[0].mxu0
      %v874 = vadd.f32 %v741, %v873
      %v875 = vpop.f32.mrb[0].mxu0
      %v876 = vpop.f32.mrb[0].mxu0
      %v877 = vadd.f32 %v741, %v876
      %v878 = vpop.f32.mrb[0].mxu0
      %879 = vmatprep.mubr.bf16.mxu0 0
      %880 = vmatmul.mubr.bf16.gmra.mrb[0].mxu0 %v719
      %v881 = vpop.f32.mrb[0].mxu0
      %v882 = vadd.f32 %v741, %v881
      %v883 = vpop.f32.mrb[0].mxu0
      %v884 = vpop.f32.mrb[0].mxu0
      %v885 = vadd.f32 %v741, %v884
      %v886 = vpop.f32.mrb[0].mxu0
      %887 = vdwg.mxu0
      %v888 = vmax.f32 %v826, 0.0
      %v889 = vmax.f32 %v829, 0.0
      %v890 = vmax.f32 %v834, 0.0
      %v891 = vmax.f32 %v837, 0.0
      %v892 = vmax.f32 %v842, 0.0
      %v893 = vmax.f32 %v845, 0.0
      %v894 = vmax.f32 %v850, 0.0
      %v895 = vmax.f32 %v853, 0.0
      %v896 = vmax.f32 %v858, 0.0
      %v897 = vmax.f32 %v861, 0.0
      %v898 = vmax.f32 %v866, 0.0
      %v899 = vmax.f32 %v869, 0.0
      %v900 = vmax.f32 %v874, 0.0
      %v901 = vmax.f32 %v877, 0.0
      %v902 = vmax.f32 %v882, 0.0
      %v903 = vmax.f32 %v885, 0.0
      %v904 = vld [vmem:[%s7] sm:$0x1]
      %v906 = vlaneseq
      %v907 = vshrl.u32 %v906, 7
      %v908 = vsub.s32 0, %v907
      %v909 = vrot.slane %v904, %v908
      %v911 = vmul.f32 %v888, %v909
      %v912 = vmul.f32 %v889, %v909
      %v913 = vmul.f32 %v890, %v909
      %v914 = vmul.f32 %v891, %v909
      %v915 = vmul.f32 %v892, %v909
      %v916 = vmul.f32 %v893, %v909
      %v917 = vmul.f32 %v894, %v909
      %v918 = vmul.f32 %v895, %v909
      %v919 = vmul.f32 %v896, %v909
      %v920 = vmul.f32 %v897, %v909
      %v921 = vmul.f32 %v898, %v909
      %v922 = vmul.f32 %v899, %v909
      %v923 = vmul.f32 %v900, %v909
      %v924 = vmul.f32 %v901, %v909
      %v925 = vmul.f32 %v902, %v909
      %v926 = vmul.f32 %v903, %v909
      %927 = vadd.xlane.f32.xlu0 %v911
      %v928 = vpop.xlane.xlu0 %927
      %929 = vadd.xlane.f32.xlu0 %v912
      %v930 = vpop.xlane.xlu0 %929
      %931 = vadd.xlane.f32.xlu0 %v913
      %v932 = vpop.xlane.xlu0 %931
      %933 = vadd.xlane.f32.xlu0 %v914
      %v934 = vpop.xlane.xlu0 %933
      %935 = vadd.xlane.f32.xlu0 %v915
      %v936 = vpop.xlane.xlu0 %935
      %937 = vadd.xlane.f32.xlu0 %v916
      %v938 = vpop.xlane.xlu0 %937
      %939 = vadd.xlane.f32.xlu0 %v917
      %v940 = vpop.xlane.xlu0 %939
      %941 = vadd.xlane.f32.xlu0 %v918
      %v942 = vpop.xlane.xlu0 %941
      %943 = vadd.xlane.f32.xlu0 %v919
      %v944 = vpop.xlane.xlu0 %943
      %945 = vadd.xlane.f32.xlu0 %v920
      %v946 = vpop.xlane.xlu0 %945
      %947 = vadd.xlane.f32.xlu0 %v921
      %v948 = vpop.xlane.xlu0 %947
      %949 = vadd.xlane.f32.xlu0 %v922
      %v950 = vpop.xlane.xlu0 %949
      %951 = vadd.xlane.f32.xlu0 %v923
      %v952 = vpop.xlane.xlu0 %951
      %953 = vadd.xlane.f32.xlu0 %v924
      %v954 = vpop.xlane.xlu0 %953
      %955 = vadd.xlane.f32.xlu0 %v925
      %v956 = vpop.xlane.xlu0 %955
      %957 = vadd.xlane.f32.xlu0 %v926
      %v958 = vpop.xlane.xlu0 %957
      %v959 = vld [vmem:[#allocation2] sm:$0x1]
      %v961 = vlaneseq
      %v962 = vshrl.u32 %v961, 7
      %v963 = vsub.s32 0, %v962
      %v964 = vrot.slane %v959, %v963
      %v966 = vadd.f32 %v928, %v964
      %v967 = vadd.f32 %v930, %v964
      %v968 = vadd.f32 %v932, %v964
      %v969 = vadd.f32 %v934, %v964
      %v970 = vadd.f32 %v936, %v964
      %v971 = vadd.f32 %v938, %v964
      %v972 = vadd.f32 %v940, %v964
      %v973 = vadd.f32 %v942, %v964
      %v974 = vadd.f32 %v944, %v964
      %v975 = vadd.f32 %v946, %v964
      %v976 = vadd.f32 %v948, %v964
      %v977 = vadd.f32 %v950, %v964
      %v978 = vadd.f32 %v952, %v964
      %v979 = vadd.f32 %v954, %v964
      %v980 = vadd.f32 %v956, %v964
      %v981 = vadd.f32 %v958, %v964
      %vm982 = vcmask 7168
      %983 = vst.msk [vmem:[%s358] sm:$0xff] %vm982, %v966
      %984 = vst.msk [vmem:[%s358 + $0x8] sm:$0xff] %vm982, %v967
      %985 = vst.msk [vmem:[%s358 + $0x10] sm:$0xff] %vm982, %v968
      %986 = vst.msk [vmem:[%s358 + $0x18] sm:$0xff] %vm982, %v969
      %987 = vst.msk [vmem:[%s358 + $0x20] sm:$0xff] %vm982, %v970
      %988 = vst.msk [vmem:[%s358 + $0x28] sm:$0xff] %vm982, %v971
      %989 = vst.msk [vmem:[%s358 + $0x30] sm:$0xff] %vm982, %v972
      %990 = vst.msk [vmem:[%s358 + $0x38] sm:$0xff] %vm982, %v973
      %991 = vst.msk [vmem:[%s358 + $0x40] sm:$0xff] %vm982, %v974
      %992 = vst.msk [vmem:[%s358 + $0x48] sm:$0xff] %vm982, %v975
      %993 = vst.msk [vmem:[%s358 + $0x50] sm:$0xff] %vm982, %v976
      %994 = vst.msk [vmem:[%s358 + $0x58] sm:$0xff] %vm982, %v977
      %995 = vst.msk [vmem:[%s358 + $0x60] sm:$0xff] %vm982, %v978
      %996 = vst.msk [vmem:[%s358 + $0x68] sm:$0xff] %vm982, %v979
      %997 = vst.msk [vmem:[%s358 + $0x70] sm:$0xff] %vm982, %v980
      %998 = vst.msk [vmem:[%s358 + $0x78] sm:$0xff] %vm982, %v981
      %s999 = smul.u32 16, %s22
      %p1000 = scmp.lt.s32.totalorder %s999, 31
      %s1001 = scalar_select %p1000, %s999, 31
      %s1002 = smul.addr %s1001, 8
      %s1003 = scalar_lea.vmem %s9, %s1002
      // Predicated region
      $region57: #{tpu_custom_call.1} parent=55 // pred_check
        %p1004 = pneg %p239
      $region58: #{tpu_custom_call.1} parent=55 // pred_check_branch
        %1006 = sbr.rel (%p1004) target = $region60
      $region59: #{tpu_custom_call.1} parent=55 // pred_region
        %s1007 = smul.u32 16, %s22
      $region60: #{tpu_custom_call.1} parent=55 // pred_fallthru
        _
    $region56: #{tpu_custom_call.1} parent=5 // pred_fallthru
      _
    %p1008 = scmp.le.s32.totalorder 2, %s17
    // Predicated region
    $region61: #{tpu_custom_call.1} parent=5 // pred_check
      %p1009 = pneg %p1008
    $region62: #{tpu_custom_call.1} parent=5 // pred_check_branch
      %1011 = sbr.rel (%p1009) target = $region64
    $region63: #{tpu_custom_call.1} parent=5 // pred_region
      %s1012 = ssub.s32 %s17, 2
      // Predicated region
      $region65: #{tpu_custom_call.1} parent=63 // pred_check
        %p1013 = pneg %p245
      $region66: #{tpu_custom_call.1} parent=63 // pred_check_branch
        %1015 = sbr.rel (%p1013) target = $region68
      $region67: #{tpu_custom_call.1} parent=63 // pred_region
        %s1016 = smul.u32 16, %s23
        %p1017 = scmp.lt.s32.totalorder %s1016, 31
        %s1018 = scalar_select %p1017, %s1016, 31
        %s1019 = smul.addr %s1018, 8
        %s1020 = scalar_lea.vmem %s9, %s1019
      $region68: #{tpu_custom_call.1} parent=63 // pred_fallthru
        _
    $region64: #{tpu_custom_call.1} parent=5 // pred_fallthru
      _
  $region6: #{tpu_custom_call.1} parent=0 // loop_footer
    %s21 = sadd.s32 1, %s17
  $region7: #{tpu_custom_call.1} parent=0 // loop_footer_branch
    %16 = sbr.rel target = $region3
  $region8: #{tpu_custom_call.1} parent=0 // loop_exit
    _

</llo_original>
